<compile_context>
chip_gen: v7x
topology: tpu7x:2x2x1
jax: 0.10.0
libtpu: 0.0.40
codegen_flags: <defaults>
</compile_context>

<pallas_src>
import functools
import math

import jax
import jax.numpy as jnp
from jax import lax
from jax.experimental import pallas as pl
from jax.experimental.pallas import tpu as pltpu


def _buffered_supported():
    """Capability probe only -- never wraps actual kernel compilation."""
    if not hasattr(pl, "Buffered"):
        return False
    try:
        pl.BlockSpec((8, 128), lambda i: (0, 0), pipeline_mode=pl.Buffered(1))
        return True
    except (TypeError, ValueError):
        return False


_HAS_BUFFERED = _buffered_supported()


def _ff_residual_kernel(x_ref, w1_ref, b1_ref, w2_ref, b2_ref, o_ref, *,
                        approximate_gelu):
    x = x_ref[...].astype(jnp.float32)                        # (tm, D)

    # LayerNorm (eps = 1e-5, PyTorch default); affine folded into w1/b1.
    # Single-pass stats: var = E[x^2] - mu^2 (clamped against cancellation).
    mu = jnp.mean(x, axis=-1, keepdims=True)
    ex2 = jnp.mean(x * x, axis=-1, keepdims=True)
    var = jnp.maximum(ex2 - mu * mu, 0.0)
    xn = (x - mu) * lax.rsqrt(var + 1e-5)                     # (tm, D)

    # Linear d -> 4d : bf16 MXU operands, f32 accumulation.
    h = jnp.dot(xn.astype(jnp.bfloat16), w1_ref[...],
                preferred_element_type=jnp.float32) + b1_ref[...]

    # GELU on the (tm, 4D) tensor in bf16 (halves vregs / VALU bundles on
    # v6e/v7x); result feeds the second matmul directly.
    hb = h.astype(jnp.bfloat16)
    if approximate_gelu:
        g = jax.nn.gelu(hb, approximate=True)      # tanh approx -> EUP slot
    else:
        # Exact (erf-based) GELU -- matches PyTorch nn.GELU default.
        g = 0.5 * hb * (1.0 + lax.erf(hb * (1.0 / math.sqrt(2.0))))
    g = g.astype(jnp.bfloat16)

    # Linear 4d -> d : bf16 MXU operands, f32 accumulation.
    y = jnp.dot(g, w2_ref[...],
                preferred_element_type=jnp.float32) + b2_ref[...]

    # Residual add with the pre-LN input.
    o_ref[...] = (y + x).astype(o_ref.dtype)


def _round_up(n, m):
    return ((n + m - 1) // m) * m


def _cdiv(a, b):
    return -(-a // b)


def _vmem_estimate_bytes(tm, D, H):
    io_tiles = 2 * 2 * tm * D * 4                  # x & out tiles, double-buffered f32
    weight_copies = 1 if _HAS_BUFFERED else 2
    weights = weight_copies * (2 * D * H * 2 + (H + D) * 4)   # bf16 w1/w2 + f32 biases
    interm = tm * H * (4 + 2) + tm * D * (4 + 2)   # h (f32 acc + bf16), xn (f32 + bf16)
    return io_tiles + weights + interm


def _vmem_budget_bytes():
    # Generation-aware budget: ~96 MiB on 128-MiB parts (v5e/v6e), ~44 MiB on
    # v7x (64 MiB physical per TensorCore; each TC holds its own weight copy).
    cap = None
    try:
        cap = int(pltpu.get_tpu_info().vmem_capacity_bytes)
    except Exception:   # hardware-info probe only; never wraps compilation
        cap = None
    if cap is not None and cap >= (100 << 20):
        return 96 << 20
    return 44 << 20


def _choose_tm(M, D, H, tm_req, budget):
    tm = max(8, min(_round_up(tm_req, 8), _round_up(M, 8)))
    # Shrink until the estimated VMEM footprint fits the budget.
    while tm > 64 and _vmem_estimate_bytes(tm, D, H) > budget:
        tm = max(8, _round_up(tm // 2, 8))
    # Keep >= 2 grid steps when there is enough work to split, so the
    # "parallel" axis can shard across v7x's two TensorCores (the extra grid
    # step costs ~0.35 us on single-core v5e/v6e -- negligible).
    if M >= 256:
        while tm > 128 and _cdiv(M, tm) < 2:
            tm = max(8, _round_up(tm // 2, 8))
    return max(8, tm)


def _build_call(Mp, D, H, tm, out_dtype, vmem_limit_bytes, approximate_gelu):
    if _HAS_BUFFERED:
        # Invariant operands: constant index_map -> fetched once; Buffered(1)
        # also drops the redundant second VMEM buffer (halves weight footprint).
        def const_spec(shape):
            return pl.BlockSpec(shape, lambda i: (0, 0),
                                pipeline_mode=pl.Buffered(1))
    else:
        def const_spec(shape):
            return pl.BlockSpec(shape, lambda i: (0, 0))

    kernel = functools.partial(_ff_residual_kernel,
                               approximate_gelu=approximate_gelu)

    cost = pl.CostEstimate(
        flops=4 * Mp * D * H + 12 * Mp * D,          # two matmuls dominate
        transcendentals=Mp * H,                      # one erf/tanh per hidden elem
        bytes_accessed=2 * Mp * D * 4 + 2 * D * H * 2 + (H + D) * 4,
    )

    return pl.pallas_call(
        kernel,
        out_shape=jax.ShapeDtypeStruct((Mp, D), out_dtype),
        grid_spec=pltpu.PrefetchScalarGridSpec(
            num_scalar_prefetch=0,
            grid=(Mp // tm,),
            in_specs=[
                pl.BlockSpec((tm, D), lambda i: (i, 0)),   # x tile (token rows)
                const_spec((D, H)),                        # w1 (affine folded, bf16)
                const_spec((1, H)),                        # b1 (folded, f32)
                const_spec((H, D)),                        # w2 (bf16)
                const_spec((1, D)),                        # b2 (f32)
            ],
            out_specs=pl.BlockSpec((tm, D), lambda i: (i, 0)),
        ),
        compiler_params=pltpu.CompilerParams(
            dimension_semantics=("parallel",),
            vmem_limit_bytes=vmem_limit_bytes),
        cost_estimate=cost,
    )


def prepare_ff_params(gamma, beta, w1, b1, w2, b2):
    """One-time parameter preparation (hoisted out of the forward path).

    Folds the LayerNorm affine into the first linear (exact, in f32):
        w1' = gamma[:, None] * w1
        b1' = b1 + beta @ w1
    and narrows the matmul weights to bf16 for the MXU (halves weight DMA).
    """
    H = w1.shape[1]
    D = w2.shape[1]
    w1f = (gamma[:, None].astype(jnp.float32) * w1.astype(jnp.float32)
           ).astype(jnp.bfloat16)                                    # (D, H)
    b1f = (b1.astype(jnp.float32)
           + beta.astype(jnp.float32) @ w1.astype(jnp.float32)
           ).reshape(1, H)                                           # (1, H) f32
    w2b = w2.astype(jnp.bfloat16)                                    # (H, D)
    b2f = b2.astype(jnp.float32).reshape(1, D)                       # (1, D)
    return w1f, b1f, w2b, b2f


def residual_add_ff(x, params, *, tm=1024, approximate_gelu=False):
    """out = fn(x) + x with fn = LayerNorm -> Linear(D,H) -> GELU -> Linear(H,D).

    x: (B, S, D) float32; params: output of prepare_ff_params().
    approximate_gelu=True switches to tanh GELU (EUP slot) -- faster but not
    numerically identical to PyTorch's default exact GELU.
    """
    # TODO(synk): Dropout inside the wrapped fn is omitted (identity in eval).
    w1f, b1f, w2b, b2f = params
    B, S, D = x.shape
    H = w1f.shape[1]
    M = B * S

    budget = _vmem_budget_bytes()
    tm = _choose_tm(M, D, H, tm, budget)
    # 2x margin over the estimate: compiler temps for LN/GELU are not counted.
    vmem_limit = int(min(budget,
                         max(32 << 20, 2 * _vmem_estimate_bytes(tm, D, H))))

    # Pad the token dim to a multiple of tm (padded zero rows stay finite
    # through LayerNorm thanks to eps, and are sliced away afterwards).
    Mp = _round_up(M, tm)
    x2 = x.reshape(M, D)
    if Mp != M:
        x2 = jnp.pad(x2, ((0, Mp - M), (0, 0)))

    out = _build_call(Mp, D, H, tm, x.dtype, vmem_limit,
                      approximate_gelu)(x2, w1f, b1f, w2b, b2f)
    return out[:M].reshape(B, S, D)


def _reference(x, gamma, beta, w1, b1, w2, b2):
    mu = jnp.mean(x, axis=-1, keepdims=True)
    var = jnp.mean((x - mu) ** 2, axis=-1, keepdims=True)
    xn = (x - mu) / jnp.sqrt(var + 1e-5) * gamma + beta
    h = xn @ w1 + b1
    h = 0.5 * h * (1.0 + lax.erf(h / jnp.sqrt(2.0)))
    y = h @ w2 + b2
    return y + x


def _run_case(key, B, S, D, expansion=4):
    H = D * expansion
    kx, kg, kb, kw1, kb1, kw2, kb2 = jax.random.split(key, 7)
    x = jax.random.normal(kx, (B, S, D), dtype=jnp.float32)
    gamma = 1.0 + 0.01 * jax.random.normal(kg, (D,), dtype=jnp.float32)
    beta = 0.01 * jax.random.normal(kb, (D,), dtype=jnp.float32)
    w1 = jax.random.normal(kw1, (D, H), dtype=jnp.float32) / math.sqrt(D)
    b1 = 0.01 * jax.random.normal(kb1, (H,), dtype=jnp.float32)
    w2 = jax.random.normal(kw2, (H, D), dtype=jnp.float32) / math.sqrt(H)
    b2 = 0.01 * jax.random.normal(kb2, (D,), dtype=jnp.float32)

    params = prepare_ff_params(gamma, beta, w1, b1, w2, b2)   # hoisted, once
    out = jax.block_until_ready(residual_add_ff(x, params))
    ref = _reference(x, gamma, beta, w1, b1, w2, b2)
    # bf16 MXU operands + bf16 GELU (f32 accumulation) -> ~1e-2-level deviation.
    err = jnp.max(jnp.abs(out - ref))
    assert jnp.allclose(out, ref, atol=5e-2, rtol=5e-2), (
        f"mismatch vs reference (max abs err {err})")


if __name__ == "__main__":
    key = jax.random.PRNGKey(0)
    k1, k2 = jax.random.split(key)
    # Small shapes consistent with the conformer block (batch, seq, emb).
    _run_case(k1, B=2, S=8, D=32)     # tiny emb; token count fits one tile
    _run_case(k2, B=2, S=13, D=128)   # lane-dense emb + exercises tail padding
    print("KERNEL_OK")
</pallas_src>

<mosaic_0001>
module attributes {stable_mosaic.version = 11 : i64} {
  func.func @_ff_residual_kernel(%arg0: i32, %arg1: memref<16x32xf32, #tpu.memory_space<vmem>>, %arg2: memref<32x128xbf16, #tpu.memory_space<vmem>>, %arg3: memref<1x128xf32, #tpu.memory_space<vmem>>, %arg4: memref<128x32xbf16, #tpu.memory_space<vmem>>, %arg5: memref<1x32xf32, #tpu.memory_space<vmem>>, %arg6: memref<16x32xf32, #tpu.memory_space<vmem>>) attributes {dimension_semantics = [#tpu.dimension_semantics<parallel>], iteration_bounds = array<i64: 1>, scalar_prefetch = 0 : i64, scratch_operands = 0 : i64, tpu.core_type = #tpu.core_type<tc>, window_params = [{transform_indices = @transform_0, window_bounds = array<i64: 16, 32>}, {pipeline_mode = #tpu.pipeline_mode<synchronous>, transform_indices = @transform_1, window_bounds = array<i64: 32, 128>}, {pipeline_mode = #tpu.pipeline_mode<synchronous>, transform_indices = @transform_2, window_bounds = array<i64: 1, 128>}, {pipeline_mode = #tpu.pipeline_mode<synchronous>, transform_indices = @transform_3, window_bounds = array<i64: 128, 32>}, {pipeline_mode = #tpu.pipeline_mode<synchronous>, transform_indices = @transform_4, window_bounds = array<i64: 1, 32>}, {transform_indices = @transform_5, window_bounds = array<i64: 16, 32>}]} {
    %c0 = arith.constant 0 : index
    %c0_0 = arith.constant 0 : index
    %0 = vector.load %arg1[%c0, %c0_0] : memref<16x32xf32, #tpu.memory_space<vmem>>, vector<16x32xf32>
    %cst = arith.constant dense<0.000000e+00> : vector<16xf32>
    %1 = vector.multi_reduction <add>, %0, %cst [1] : vector<16x32xf32> to vector<16xf32>
    %2 = vector.shape_cast %1 : vector<16xf32> to vector<16x1xf32>
    %cst_1 = arith.constant 3.200000e+01 : f32
    %3 = vector.broadcast %cst_1 : f32 to vector<16x1xf32>
    %4 = arith.divf %2, %3 : vector<16x1xf32>
    %5 = arith.mulf %0, %0 : vector<16x32xf32>
    %cst_2 = arith.constant dense<0.000000e+00> : vector<16xf32>
    %6 = vector.multi_reduction <add>, %5, %cst_2 [1] : vector<16x32xf32> to vector<16xf32>
    %7 = vector.shape_cast %6 : vector<16xf32> to vector<16x1xf32>
    %cst_3 = arith.constant 3.200000e+01 : f32
    %8 = vector.broadcast %cst_3 : f32 to vector<16x1xf32>
    %9 = arith.divf %7, %8 : vector<16x1xf32>
    %10 = arith.mulf %4, %4 : vector<16x1xf32>
    %11 = arith.subf %9, %10 : vector<16x1xf32>
    %cst_4 = arith.constant 0.000000e+00 : f32
    %12 = vector.broadcast %cst_4 : f32 to vector<16x1xf32>
    %13 = arith.maximumf %11, %12 : vector<16x1xf32>
    %14 = vector.broadcast %4 : vector<16x1xf32> to vector<16x32xf32>
    %15 = arith.subf %0, %14 : vector<16x32xf32>
    %cst_5 = arith.constant 9.99999974E-6 : f32
    %16 = vector.broadcast %cst_5 : f32 to vector<16x1xf32>
    %17 = arith.addf %13, %16 : vector<16x1xf32>
    %18 = math.rsqrt %17 : vector<16x1xf32>
    %19 = vector.broadcast %18 : vector<16x1xf32> to vector<16x32xf32>
    %20 = arith.mulf %15, %19 : vector<16x32xf32>
    %21 = arith.truncf %20 : vector<16x32xf32> to vector<16x32xbf16>
    %c0_6 = arith.constant 0 : index
    %c0_7 = arith.constant 0 : index
    %22 = vector.load %arg2[%c0_6, %c0_7] : memref<32x128xbf16, #tpu.memory_space<vmem>>, vector<32x128xbf16>
    %cst_8 = arith.constant dense<0.000000e+00> : vector<16x128xf32>
    %23 = tpu.matmul %21, %22, %cst_8 {dimension_numbers = #tpu.dot_dimension_numbers<[1], [0], [0], [1], [0, 0, 1, 1], [], []>} : vector<16x32xbf16>, vector<32x128xbf16>, vector<16x128xf32> -> vector<16x128xf32>
    %c0_9 = arith.constant 0 : index
    %c0_10 = arith.constant 0 : index
    %24 = vector.load %arg3[%c0_9, %c0_10] : memref<1x128xf32, #tpu.memory_space<vmem>>, vector<1x128xf32>
    %25 = vector.broadcast %24 : vector<1x128xf32> to vector<16x128xf32>
    %26 = arith.addf %23, %25 : vector<16x128xf32>
    %27 = arith.truncf %26 : vector<16x128xf32> to vector<16x128xbf16>
    %cst_11 = arith.constant 5.000000e-01 : bf16
    %28 = vector.broadcast %cst_11 : bf16 to vector<16x128xbf16>
    %29 = arith.mulf %28, %27 : vector<16x128xbf16>
    %cst_12 = arith.constant 7.070310e-01 : bf16
    %30 = vector.broadcast %cst_12 : bf16 to vector<16x128xbf16>
    %31 = arith.mulf %27, %30 : vector<16x128xbf16>
    %32 = math.erf %31 : vector<16x128xbf16>
    %cst_13 = arith.constant 1.000000e+00 : bf16
    %33 = vector.broadcast %cst_13 : bf16 to vector<16x128xbf16>
    %34 = arith.addf %33, %32 : vector<16x128xbf16>
    %35 = arith.mulf %29, %34 : vector<16x128xbf16>
    %c0_14 = arith.constant 0 : index
    %c0_15 = arith.constant 0 : index
    %36 = vector.load %arg4[%c0_14, %c0_15] : memref<128x32xbf16, #tpu.memory_space<vmem>>, vector<128x32xbf16>
    %cst_16 = arith.constant dense<0.000000e+00> : vector<16x32xf32>
    %37 = tpu.matmul %35, %36, %cst_16 {dimension_numbers = #tpu.dot_dimension_numbers<[1], [0], [0], [1], [0, 0, 1, 1], [], []>} : vector<16x128xbf16>, vector<128x32xbf16>, vector<16x32xf32> -> vector<16x32xf32>
    %c0_17 = arith.constant 0 : index
    %c0_18 = arith.constant 0 : index
    %38 = vector.load %arg5[%c0_17, %c0_18] : memref<1x32xf32, #tpu.memory_space<vmem>>, vector<1x32xf32>
    %39 = vector.broadcast %38 : vector<1x32xf32> to vector<16x32xf32>
    %40 = arith.addf %37, %39 : vector<16x32xf32>
    %41 = arith.addf %40, %0 : vector<16x32xf32>
    %c0_19 = arith.constant 0 : index
    %c0_20 = arith.constant 0 : index
    %42 = vector.load %arg6[%c0_19, %c0_20] : memref<16x32xf32, #tpu.memory_space<vmem>>, vector<16x32xf32>
    tpu.vector_store %arg6[%c0_19, %c0_20], %41 {strides = array<i32>} : memref<16x32xf32, #tpu.memory_space<vmem>>, vector<16x32xf32>,
    return
  }
  func.func @transform_0(%arg0: i32) -> (i32, i32) {
    %c0_i32 = arith.constant 0 : i32
    %c0_i32_0 = arith.constant 0 : i32
    return %arg0, %c0_i32 : i32, i32
  }
  func.func @transform_1(%arg0: i32) -> (i32, i32) {
    %c0_i32 = arith.constant 0 : i32
    %c0_i32_0 = arith.constant 0 : i32
    %c0_i32_1 = arith.constant 0 : i32
    return %c0_i32, %c0_i32_0 : i32, i32
  }
  func.func @transform_2(%arg0: i32) -> (i32, i32) {
    %c0_i32 = arith.constant 0 : i32
    %c0_i32_0 = arith.constant 0 : i32
    %c0_i32_1 = arith.constant 0 : i32
    return %c0_i32, %c0_i32_0 : i32, i32
  }
  func.func @transform_3(%arg0: i32) -> (i32, i32) {
    %c0_i32 = arith.constant 0 : i32
    %c0_i32_0 = arith.constant 0 : i32
    %c0_i32_1 = arith.constant 0 : i32
    return %c0_i32, %c0_i32_0 : i32, i32
  }
  func.func @transform_4(%arg0: i32) -> (i32, i32) {
    %c0_i32 = arith.constant 0 : i32
    %c0_i32_0 = arith.constant 0 : i32
    %c0_i32_1 = arith.constant 0 : i32
    return %c0_i32, %c0_i32_0 : i32, i32
  }
  func.func @transform_5(%arg0: i32) -> (i32, i32) {
    %c0_i32 = arith.constant 0 : i32
    %c0_i32_0 = arith.constant 0 : i32
    return %arg0, %c0_i32 : i32, i32
  }
}

</mosaic_0001>

<llo_original>
// kernel: tpu_custom_call.1
$region0: #{tpu_custom_call.1}
  #allocation0 [shape = 'u32[]', space=smem, size = 0x4, offset = 0x4, fixed_abs, tag = 'smem constant byte address 0x4 - core index']
  #allocation1 [shape = 'u32[144,128]{1,0:T(1,128)}', space=vmem, size = 0x12000, scoped, tag = 'internal scratch']
  %s0 = inlined_call_operand.vmem [shape: f32[16,32], index: 0, kind: input, shape index: {}]
  %s1 = inlined_call_operand.vmem [shape: bf16[32,128], index: 1, kind: input, shape index: {}]
  %s2 = inlined_call_operand.vmem [shape: f32[1,128], index: 2, kind: input, shape index: {}]
  %s3 = inlined_call_operand.vmem [shape: bf16[128,32], index: 3, kind: input, shape index: {}]
  %s4 = inlined_call_operand.vmem [shape: f32[1,32], index: 4, kind: input, shape index: {}]
  %s5 = inlined_call_operand.hbm [shape: f32[16,32], index: 5, kind: output, shape index: {}]
  %s6 = sld [smem:[#allocation0]]
  $region30: #{tpu_custom_call.1} parent=0
    _
  %s8 = ssub.s32 1, %s6
  %s9 = scalar_select 0, %s8, %s6
  $region1: #{tpu_custom_call.1} parent=0
    #allocation2 [shape = 'u8[8192]{0}', space=vmem, size = 0x2000, scoped, tag = 'output window, operand 0, single buffered']
    #allocation3 [shape = 's32[1]{0}', space=sflag, size = 0x4, scoped, tag = 'scoped memory for tpu_custom_call.1']
    %10 = vsyncpa [#allocation3], 0
    // Predicated region
    $region2: #{tpu_custom_call.1} parent=1 // pred_check
      _
    $region3: #{tpu_custom_call.1} parent=1 // pred_check_branch
      %12 = sbr.rel (0) target = $region5
    $region4: #{tpu_custom_call.1} parent=1 // pred_region
      _
    $region5: #{tpu_custom_call.1} parent=1 // pred_fallthru
      _
    // Predicated region
    $region6: #{tpu_custom_call.1} parent=1 // pred_check
      _
    $region7: #{tpu_custom_call.1} parent=1 // pred_check_branch
      %14 = sbr.rel (0) target = $region9
    $region8: #{tpu_custom_call.1} parent=1 // pred_region
      _
    $region9: #{tpu_custom_call.1} parent=1 // pred_fallthru
      _
    // Predicated region
    $region10: #{tpu_custom_call.1} parent=1 // pred_check
      _
    $region11: #{tpu_custom_call.1} parent=1 // pred_check_branch
      %16 = sbr.rel (0) target = $region13
    $region12: #{tpu_custom_call.1} parent=1 // pred_region
      _
    $region13: #{tpu_custom_call.1} parent=1 // pred_fallthru
      _
    // Predicated region
    $region14: #{tpu_custom_call.1} parent=1 // pred_check
      _
    $region15: #{tpu_custom_call.1} parent=1 // pred_check_branch
      %18 = sbr.rel (0) target = $region17
    $region16: #{tpu_custom_call.1} parent=1 // pred_region
      _
    $region17: #{tpu_custom_call.1} parent=1 // pred_fallthru
      _
    // Predicated region
    $region18: #{tpu_custom_call.1} parent=1 // pred_check
      _
    $region19: #{tpu_custom_call.1} parent=1 // pred_check_branch
      %20 = sbr.rel (0) target = $region21
    $region20: #{tpu_custom_call.1} parent=1 // pred_region
      _
    $region21: #{tpu_custom_call.1} parent=1 // pred_fallthru
      _
    %v25 = vld [vmem:[%s0] sm:$0xff]
    %v26 = vld [vmem:[%s0 + $0x8] sm:$0xff]
    %vm27 = vcmask 261120
    %v28 = vsel %vm27, %v25, 0.0
    %29 = vadd.xlane.f32.xlu0 %v28
    %v30 = vpop.xlane.xlu0 %29
    %v31 = vsel %vm27, %v26, 0.0
    %32 = vadd.xlane.f32.xlu0 %v31
    %v33 = vpop.xlane.xlu0 %32
    %v34 = vrcp.pop 32.0
    %v35 = vmul.f32 %v30, %v34
    %v36 = vmul.f32 %v33, %v34
    %v37 = vmul.f32 %v25, %v25
    %v38 = vmul.f32 %v26, %v26
    %v39 = vsel %vm27, %v37, 0.0
    %40 = vadd.xlane.f32.xlu0 %v39
    %v41 = vpop.xlane.xlu0 %40
    %v42 = vsel %vm27, %v38, 0.0
    %43 = vadd.xlane.f32.xlu0 %v42
    %v44 = vpop.xlane.xlu0 %43
    %v45 = vmul.f32 %v41, %v34
    %v46 = vmul.f32 %v44, %v34
    %v47 = vmul.f32 %v35, %v35
    %v48 = vmul.f32 %v36, %v36
    %v49 = vsub.f32 %v45, %v47
    %v50 = vsub.f32 %v46, %v48
    %v51 = vmax.f32 %v49, 0.0
    %v52 = vmax.f32 %v50, 0.0
    %v53 = vsub.f32 %v25, %v35
    %v54 = vsub.f32 %v26, %v36
    %v55 = vadd.f32 %v51, 1e-05
    %v56 = vadd.f32 %v52, 1e-05
    %v57 = vrsqrt.pop %v55
    %v58 = vrsqrt.pop %v56
    %v59 = vmul.f32 %v53, %v57
    %v60 = vmul.f32 %v54, %v58
    %v61 = vpack.c.bf16 %v60, %v59
    %v62 = vld [vmem:[%s1] sm:$0xf]
    %v63 = vld [vmem:[%s1 + $0x4] sm:$0xf]
    %v64 = vld [vmem:[%s1 + $0x8] sm:$0xf]
    %v65 = vld [vmem:[%s1 + $0xc] sm:$0xf]
    %v66 = vld [vmem:[%s2] sm:$0x1]
    %v68 = vlaneseq
    %v69 = vshrl.u32 %v68, 7
    %v70 = vsub.s32 0, %v69
    %v71 = vrot.slane %v66, %v70
    %v77 = vunpack.c.l.b16 %v62
    %v78 = vunpack.c.l.b16 %v63
    %v79 = vunpack.c.l.b16 %v64
    %v80 = vunpack.c.l.b16 %v65
    %v81 = vpack.c.b16 %v78, %v77
    %v82 = vpack.c.b16 %v80, %v79
    %v86 = vsel %vm27, %v61, 0
    %88 = vmatprep.subr.bf16.mxu0 0
    %89 = vmatpush1.bf16.msra.mxu0 %v81
    %90 = vmatprep.subr.bf16.mxu0 0
    %91 = vmatpush1.bf16.msra.mxu0 %v82
    %92 = vmatprep.subr.bf16.mxu0 0
    %93 = vmatpush1.bf16.msra.mxu0 0
    %94 = vmatprep.subr.bf16.mxu0 0
    %95 = vmatpush1.bf16.msra.mxu0 0
    %96 = vmatprep.subr.bf16.mxu0 0
    %97 = vmatpush1.bf16.msra.mxu0 0
    %98 = vmatprep.subr.bf16.mxu0 0
    %99 = vmatpush1.bf16.msra.mxu0 0
    %100 = vmatprep.subr.bf16.mxu0 0
    %101 = vmatpush1.bf16.msra.mxu0 0
    %102 = vmatprep.subr.bf16.mxu0 0
    %103 = vmatpush1.bf16.msra.mxu0 0
    %104 = vmatprep.subr.bf16.mxu0 0
    %105 = vmatpush1.bf16.msra.mxu0 0
    %106 = vmatprep.subr.bf16.mxu0 0
    %107 = vmatpush1.bf16.msra.mxu0 0
    %108 = vmatprep.subr.bf16.mxu0 0
    %109 = vmatpush1.bf16.msra.mxu0 0
    %110 = vmatprep.subr.bf16.mxu0 0
    %111 = vmatpush1.bf16.msra.mxu0 0
    %112 = vmatprep.subr.bf16.mxu0 0
    %113 = vmatpush1.bf16.msra.mxu0 0
    %114 = vmatprep.subr.bf16.mxu0 0
    %115 = vmatpush1.bf16.msra.mxu0 0
    %116 = vmatprep.subr.bf16.mxu0 0
    %117 = vmatpush1.bf16.msra.mxu0 0
    %118 = vmatprep.subr.bf16.mxu0 0
    %119 = vmatpush1.bf16.msra.mxu0 0
    %120 = vmatprep.mubr.bf16.mxu0 0
    %121 = vmatmul.mubr.bf16.gmra.mrb[0].mxu0 %v86
    %v122 = vpop.f32.mrb[0].mxu0
    %v123 = vadd.f32 %v71, %v122
    %v124 = vpop.f32.mrb[0].mxu0
    %v125 = vpop.f32.mrb[0].mxu0
    %v126 = vadd.f32 %v71, %v125
    %v127 = vpop.f32.mrb[0].mxu0
    %128 = vdwg.mxu0
    %v129 = vpack.c.bf16 %v126, %v123
    %v130 = vmul.bf16 %v129, 1056980736
    %v131 = vmul.bf16 %v129, 1060454197
    %v132 = verf.bf16.pop %v131
    %v133 = vadd.bf16 %v132, 1065369472
    %v134 = vmul.bf16 %v130, %v133
    %v135 = vld [vmem:[%s3] sm:$0xf]
    %v136 = vld [vmem:[%s3 + $0x4] sm:$0xf]
    %v137 = vld [vmem:[%s3 + $0x8] sm:$0xf]
    %v138 = vld [vmem:[%s3 + $0xc] sm:$0xf]
    %v139 = vld [vmem:[%s3 + $0x10] sm:$0xf]
    %v140 = vld [vmem:[%s3 + $0x14] sm:$0xf]
    %v141 = vld [vmem:[%s3 + $0x18] sm:$0xf]
    %v142 = vld [vmem:[%s3 + $0x1c] sm:$0xf]
    %v143 = vld [vmem:[%s3 + $0x20] sm:$0xf]
    %v144 = vld [vmem:[%s3 + $0x24] sm:$0xf]
    %v145 = vld [vmem:[%s3 + $0x28] sm:$0xf]
    %v146 = vld [vmem:[%s3 + $0x2c] sm:$0xf]
    %v147 = vld [vmem:[%s3 + $0x30] sm:$0xf]
    %v148 = vld [vmem:[%s3 + $0x34] sm:$0xf]
    %v149 = vld [vmem:[%s3 + $0x38] sm:$0xf]
    %v150 = vld [vmem:[%s3 + $0x3c] sm:$0xf]
    %v151 = vld [vmem:[%s4] sm:$0x1]
    %v153 = vlaneseq
    %v154 = vshrl.u32 %v153, 7
    %v155 = vsub.s32 0, %v154
    %v156 = vrot.slane %v151, %v155
    %v174 = vunpack.c.l.b16 %v135
    %v175 = vunpack.c.l.b16 %v136
    %v176 = vunpack.c.l.b16 %v137
    %v177 = vunpack.c.l.b16 %v138
    %v178 = vunpack.c.l.b16 %v139
    %v179 = vunpack.c.l.b16 %v140
    %v180 = vunpack.c.l.b16 %v141
    %v181 = vunpack.c.l.b16 %v142
    %v182 = vunpack.c.l.b16 %v143
    %v183 = vunpack.c.l.b16 %v144
    %v184 = vunpack.c.l.b16 %v145
    %v185 = vunpack.c.l.b16 %v146
    %v186 = vunpack.c.l.b16 %v147
    %v187 = vunpack.c.l.b16 %v148
    %v188 = vunpack.c.l.b16 %v149
    %v189 = vunpack.c.l.b16 %v150
    %v190 = vpack.c.b16 %v175, %v174
    %v191 = vpack.c.b16 %v177, %v176
    %v192 = vpack.c.b16 %v179, %v178
    %v193 = vpack.c.b16 %v181, %v180
    %v194 = vpack.c.b16 %v183, %v182
    %v195 = vpack.c.b16 %v185, %v184
    %v196 = vpack.c.b16 %v187, %v186
    %v197 = vpack.c.b16 %v189, %v188
    %206 = vmatprep.subr.bf16.mxu0 0
    %207 = vmatpush1.bf16.msra.mxu0 %v190
    %208 = vmatprep.subr.bf16.mxu0 0
    %209 = vmatpush1.bf16.msra.mxu0 %v191
    %210 = vmatprep.subr.bf16.mxu0 0
    %211 = vmatpush1.bf16.msra.mxu0 %v192
    %212 = vmatprep.subr.bf16.mxu0 0
    %213 = vmatpush1.bf16.msra.mxu0 %v193
    %214 = vmatprep.subr.bf16.mxu0 0
    %215 = vmatpush1.bf16.msra.mxu0 %v194
    %216 = vmatprep.subr.bf16.mxu0 0
    %217 = vmatpush1.bf16.msra.mxu0 %v195
    %218 = vmatprep.subr.bf16.mxu0 0
    %219 = vmatpush1.bf16.msra.mxu0 %v196
    %220 = vmatprep.subr.bf16.mxu0 0
    %221 = vmatpush1.bf16.msra.mxu0 %v197
    %222 = vmatprep.subr.bf16.mxu0 0
    %223 = vmatpush1.bf16.msra.mxu0 0
    %224 = vmatprep.subr.bf16.mxu0 0
    %225 = vmatpush1.bf16.msra.mxu0 0
    %226 = vmatprep.subr.bf16.mxu0 0
    %227 = vmatpush1.bf16.msra.mxu0 0
    %228 = vmatprep.subr.bf16.mxu0 0
    %229 = vmatpush1.bf16.msra.mxu0 0
    %230 = vmatprep.subr.bf16.mxu0 0
    %231 = vmatpush1.bf16.msra.mxu0 0
    %232 = vmatprep.subr.bf16.mxu0 0
    %233 = vmatpush1.bf16.msra.mxu0 0
    %234 = vmatprep.subr.bf16.mxu0 0
    %235 = vmatpush1.bf16.msra.mxu0 0
    %236 = vmatprep.subr.bf16.mxu0 0
    %237 = vmatpush1.bf16.msra.mxu0 0
    %238 = vmatprep.mubr.bf16.mxu0 0
    %239 = vmatmul.mubr.bf16.gmra.mrb[0].mxu0 %v134
    %v240 = vpop.f32.mrb[0].mxu0
    %v241 = vadd.f32 %v156, %v240
    %v242 = vpop.f32.mrb[0].mxu0
    %v243 = vpop.f32.mrb[0].mxu0
    %v244 = vadd.f32 %v156, %v243
    %v245 = vpop.f32.mrb[0].mxu0
    %246 = vdwg.mxu0
    %v247 = vadd.f32 %v241, %v25
    %v248 = vadd.f32 %v244, %v26
    %249 = vst.msk [vmem:[#allocation2] sm:$0xff] %vm27, %v247
    %250 = vst.msk [vmem:[#allocation2 + $0x8] sm:$0xff] %vm27, %v248
    // Predicated region
    $region22: #{tpu_custom_call.1} parent=1 // pred_check
      _
    $region23: #{tpu_custom_call.1} parent=1 // pred_check_branch
      %252 = sbr.rel (0) target = $region25
    $region24: #{tpu_custom_call.1} parent=1 // pred_region
      %s254 = ssub.s32 256, 256
      %255 = vsyncadd [#allocation3], %s254
      %s256 = sshll.u32 [#allocation2], 4
      %s257 = int_to_ptr.vmem [resolvable:$true] %s256
      %262 = dma.vmem_to_hbm [thread:$0]  %s257, 256, %s5, [#allocation3], 128, 128, 8
    $region25: #{tpu_custom_call.1} parent=1 // pred_fallthru
      _
    // Predicated region
    $region26: #{tpu_custom_call.1} parent=1 // pred_check
      _
    $region27: #{tpu_custom_call.1} parent=1 // pred_check_branch
      %264 = sbr.rel (0) target = $region29
    $region28: #{tpu_custom_call.1} parent=1 // pred_region
      %265 = dma.done [#allocation3], 256
    $region29: #{tpu_custom_call.1} parent=1 // pred_fallthru
      _
    %266 = vsyncpa [#allocation3], 1

</llo_original>
